<compile_context>
chip_gen: v5e
topology: v5e:2x2
jax: 0.10.0
libtpu: 0.0.40
codegen_flags: <defaults>
</compile_context>

<pallas_src>
import functools
import math

import numpy as np
import jax
import jax.numpy as jnp
from jax import lax
from jax.experimental import pallas as pl
from jax.experimental.pallas import tpu as pltpu

_VMEM_LIMIT = 48 * 1024 * 1024  # leaves headroom even on v7x (64 MiB physical)


def _pick_tile(dim, candidates):
    """Largest preferred tile that evenly divides `dim`; else the full dim."""
    for c in candidates:
        if dim >= c and dim % c == 0:
            return c
    return dim


# ----------------------------------------------------------------------------
# Tiled linear (nn.Linear, bias=False):  y = x @ W^T, W stored as (out, in).
# ----------------------------------------------------------------------------
def _linear_kernel(x_ref, w_ref, o_ref, acc_ref):
    @pl.when(pl.program_id(2) == 0)
    def _():
        acc_ref[...] = jnp.zeros_like(acc_ref)

    # contract x's dim 1 with w's dim 1: no in-kernel transpose of the weight.
    acc_ref[...] += lax.dot_general(
        x_ref[...], w_ref[...],
        dimension_numbers=(((1,), (1,)), ((), ())),
        preferred_element_type=jnp.float32)

    @pl.when(pl.program_id(2) == pl.num_programs(2) - 1)
    def _():
        o_ref[...] = acc_ref[...].astype(o_ref.dtype)


def linear_no_bias(x2d, w):
    M, K = x2d.shape
    Dout, K2 = w.shape
    assert K == K2
    tm = _pick_tile(M, candidates=(1024, 512, 256, 128))
    tn = _pick_tile(Dout, candidates=(512, 256, 128))
    tk = _pick_tile(K, candidates=(512, 256, 128))
    grid = (M // tm, Dout // tn, K // tk)
    return pl.pallas_call(
        _linear_kernel,
        out_shape=jax.ShapeDtypeStruct((M, Dout), x2d.dtype),
        grid_spec=pltpu.PrefetchScalarGridSpec(
            num_scalar_prefetch=0,
            grid=grid,
            in_specs=[
                pl.BlockSpec((tm, tk), lambda i, j, k: (i, k)),
                pl.BlockSpec((tn, tk), lambda i, j, k: (j, k)),
            ],
            out_specs=pl.BlockSpec((tm, tn), lambda i, j, k: (i, j)),
            scratch_shapes=[pltpu.VMEM((tm, tn), jnp.float32)],
        ),
        compiler_params=pltpu.CompilerParams(
            dimension_semantics=("parallel", "parallel", "arbitrary"),
            vmem_limit_bytes=_VMEM_LIMIT),
    )(x2d, w)


# ----------------------------------------------------------------------------
# Flash-style multi-head attention, heads folded into lanes (token-major slabs).
# Grid: (batch, query-tile, kv-tile["arbitrary"]).  Per grid step, all heads
# share the Q/K/V/mask DMAs; per-head running (max, denom) and the (tq, Hv)
# output accumulator live in VMEM scratch across kv steps.
# ----------------------------------------------------------------------------
def _flash_mha_kernel(*refs, num_heads, hd_q, hd_v, has_mask):
    if has_mask:
        q_ref, k_ref, v_ref, m_ref, o_ref, m_sc, l_sc, acc_sc = refs
    else:
        q_ref, k_ref, v_ref, o_ref, m_sc, l_sc, acc_sc = refs
        m_ref = None

    kv = pl.program_id(2)

    @pl.when(kv == 0)
    def _():
        m_sc[...] = jnp.full_like(m_sc, -1e30)
        l_sc[...] = jnp.zeros_like(l_sc)
        acc_sc[...] = jnp.zeros_like(acc_sc)

    q_all = q_ref[0]              # (tq, H*hd_q)  1/sqrt(hd) already folded in
    k_all = k_ref[0]              # (tk, H*hd_q)
    v_all = v_ref[0]              # (tk, H*hd_v)
    if has_mask:
        masked = m_ref[0] == 0.0  # (1, tk) -> broadcasts over query rows

    for h in range(num_heads):    # static unroll; heads share the K/V tile DMA
        q = q_all[:, h * hd_q:(h + 1) * hd_q]            # (tq, hd_q)
        k = k_all[:, h * hd_q:(h + 1) * hd_q]            # (tk, hd_q)
        v = v_all[:, h * hd_v:(h + 1) * hd_v]            # (tk, hd_v)

        # q @ k^T without materializing a transpose of k.
        s = lax.dot_general(q, k, (((1,), (1,)), ((), ())),
                            preferred_element_type=jnp.float32)
        if has_mask:
            s = jnp.where(masked, -100000.0, s)

        m_prev = m_sc[h]                                  # (tq, 1)
        m_new = jnp.maximum(m_prev, jnp.max(s, axis=-1, keepdims=True))
        alpha = jnp.exp(m_prev - m_new)                   # (tq, 1)
        p = jnp.exp(s - m_new)                            # (tq, tk)

        # denominator = full softmax denominator (masked entries' exp, which
        # matches the reference where masking only re-zeroes the weights).
        l_sc[h] = alpha * l_sc[h] + jnp.sum(p, axis=-1, keepdims=True)
        if has_mask:
            p = jnp.where(masked, 0.0, p)                 # masked_fill(0) on weights

        sl = slice(h * hd_v, (h + 1) * hd_v)
        acc_sc[:, sl] = alpha * acc_sc[:, sl] + jnp.dot(
            p.astype(v.dtype), v, preferred_element_type=jnp.float32)
        m_sc[h] = m_new

    @pl.when(kv == pl.num_programs(2) - 1)
    def _():
        for h in range(num_heads):
            sl = slice(h * hd_v, (h + 1) * hd_v)
            inv_l = pl.reciprocal(l_sc[h], approx=True)   # EUP slot
            acc_sc[:, sl] = acc_sc[:, sl] * inv_l
        # single lane-dense store of the full (tq, H*hd_v) slab
        o_ref[0] = acc_sc[...].astype(o_ref.dtype)


def multi_head_attention(queries, keys, values, params, num_heads, mask=None):
    """Pallas forward of MultiHeadAttention. queries/keys/values: (B, L, D)."""
    B, Lq, Dq = queries.shape
    _, Lk, Dk = keys.shape
    _, Lv, Dv = values.shape
    assert Lk == Lv, "keys/values must share sequence length"
    assert Lq == Lv, "module's post-attention view() assumes len_query == len_values"
    hd_q = Dq // num_heads        # head_dim_query == head_dim_keys
    hd_v = Dv // num_heads        # head_dim_values
    Hq = num_heads * hd_q
    Hv = num_heads * hd_v

    # Fold 1/sqrt(head_dim_keys) into the query weight: zero in-kernel cost.
    scale = 1.0 / math.sqrt(hd_q)
    q_w = (params["query_w"].astype(jnp.float32) * scale).astype(params["query_w"].dtype)

    # --- input projections (tiled Pallas matmuls), kept token-major ---
    q = linear_no_bias(queries.reshape(B * Lq, Dq), q_w).reshape(B, Lq, Hq)
    k = linear_no_bias(keys.reshape(B * Lk, Dk), params["keys_w"]).reshape(B, Lk, Hq)
    v = linear_no_bias(values.reshape(B * Lv, Dv), params["values_w"]).reshape(B, Lv, Hv)

    tq = _pick_tile(Lq, candidates=(256, 128))
    tkv = _pick_tile(Lk, candidates=(512, 256, 128))
    grid = (B, Lq // tq, Lk // tkv)

    has_mask = mask is not None
    kern = functools.partial(_flash_mha_kernel, num_heads=num_heads,
                             hd_q=hd_q, hd_v=hd_v, has_mask=has_mask)

    in_specs = [
        pl.BlockSpec((1, tq, Hq), lambda b, i, kv: (b, i, 0)),
        pl.BlockSpec((1, tkv, Hq), lambda b, i, kv: (b, kv, 0)),
        pl.BlockSpec((1, tkv, Hv), lambda b, i, kv: (b, kv, 0)),
    ]
    operands = [q, k, v]
    if has_mask:
        # raw key-padding mask (B, 1, Lk); broadcast over query rows in-kernel
        mask_f = mask.reshape(B, 1, Lk).astype(jnp.float32)
        in_specs.append(pl.BlockSpec((1, 1, tkv), lambda b, i, kv: (b, 0, kv)))
        operands.append(mask_f)

    attn_out = pl.pallas_call(
        kern,
        out_shape=jax.ShapeDtypeStruct((B, Lq, Hv), q.dtype),
        grid_spec=pltpu.PrefetchScalarGridSpec(
            num_scalar_prefetch=0,
            grid=grid,
            in_specs=in_specs,
            out_specs=pl.BlockSpec((1, tq, Hv), lambda b, i, kv: (b, i, 0)),
            scratch_shapes=[
                pltpu.VMEM((num_heads, tq, 1), jnp.float32),   # running max
                pltpu.VMEM((num_heads, tq, 1), jnp.float32),   # running denom
                pltpu.VMEM((tq, Hv), jnp.float32),             # output accumulator
            ],
        ),
        compiler_params=pltpu.CompilerParams(
            dimension_semantics=("parallel", "parallel", "arbitrary"),
            vmem_limit_bytes=_VMEM_LIMIT),
    )(*operands)

    # output projection directly on the token-major slab (no head transpose)
    out = linear_no_bias(attn_out.reshape(B * Lq, Hv), params["ff_w"])
    return out.reshape(B, Lq, Dv)


# ----------------------------------------------------------------------------
# Pure-JAX reference (mirrors the PyTorch forward exactly) for verification.
# ----------------------------------------------------------------------------
def reference_mha(queries, keys, values, params, num_heads, mask=None):
    B, Lq, Dq = queries.shape
    _, Lk, Dk = keys.shape
    _, Lv, Dv = values.shape
    hd_q = Dq // num_heads
    hd_v = Dv // num_heads
    q = (queries @ params["query_w"].T).reshape(B, Lq, num_heads, hd_q).transpose(0, 2, 1, 3)
    k = (keys @ params["keys_w"].T).reshape(B, Lk, num_heads, hd_q).transpose(0, 2, 1, 3)
    v = (values @ params["values_w"].T).reshape(B, Lv, num_heads, hd_v).transpose(0, 2, 1, 3)
    s = jnp.einsum("bhqd,bhkd->bhqk", q, k) / math.sqrt(hd_q)
    if mask is not None:
        m = jnp.broadcast_to(mask[:, None, None, :], (B, num_heads, Lq, Lk))
        s = jnp.where(m == 0, -100000.0, s)
    p = jax.nn.softmax(s, axis=-1)
    if mask is not None:
        p = jnp.where(m == 0, 0.0, p)
    o = jnp.einsum("bhqk,bhkd->bhqd", p, v)
    o = o.transpose(0, 2, 1, 3).reshape(B, Lv, num_heads * hd_v)
    return o @ params["ff_w"].T


if __name__ == "__main__":
    # Small shapes consistent with the module.
    B, L = 2, 8
    input_dim_query = input_dim_keys = input_dim_values = 32
    num_heads = 4
    hd_q = input_dim_query // num_heads
    hd_v = input_dim_values // num_heads

    key = jax.random.PRNGKey(0)
    k0, k1, k2, k3, k4, k5, k6, k7 = jax.random.split(key, 8)

    # Deterministic synthetic parameters (nn.Linear weights: (out, in), no bias).
    params = {
        "query_w": 0.1 * jax.random.normal(k0, (num_heads * hd_q, input_dim_query), jnp.float32),
        "keys_w": 0.1 * jax.random.normal(k1, (num_heads * hd_q, input_dim_keys), jnp.float32),
        "values_w": 0.1 * jax.random.normal(k2, (num_heads * hd_v, input_dim_values), jnp.float32),
        "ff_w": 0.1 * jax.random.normal(k3, (input_dim_values, num_heads * hd_v), jnp.float32),
    }

    queries = jax.random.normal(k4, (B, L, input_dim_query), jnp.float32)
    keys = jax.random.normal(k5, (B, L, input_dim_keys), jnp.float32)
    values = jax.random.normal(k6, (B, L, input_dim_values), jnp.float32)

    # padding mask over key positions (B, Lk), first position always valid
    mask = (jax.random.uniform(k7, (B, L)) > 0.3).astype(jnp.int32)
    mask = mask.at[:, 0].set(1)

    out = multi_head_attention(queries, keys, values, params, num_heads, mask=mask)
    out = jax.block_until_ready(out)

    ref = reference_mha(queries, keys, values, params, num_heads, mask=mask)
    # approx reciprocal (EUP) in the softmax normalization -> relaxed tolerance
    np.testing.assert_allclose(np.asarray(out), np.asarray(ref), rtol=2e-3, atol=2e-3)

    # Also exercise the mask=None (specialized, mask-free kernel) path.
    out_nm = jax.block_until_ready(
        multi_head_attention(queries, keys, values, params, num_heads, mask=None))
    ref_nm = reference_mha(queries, keys, values, params, num_heads, mask=None)
    np.testing.assert_allclose(np.asarray(out_nm), np.asarray(ref_nm), rtol=2e-3, atol=2e-3)

    print("KERNEL_OK")
</pallas_src>

<mosaic_0001>
module attributes {stable_mosaic.version = 11 : i64} {
  func.func @_linear_kernel(%arg0: i32, %arg1: i32, %arg2: i32, %arg3: memref<16x32xf32, #tpu.memory_space<vmem>>, %arg4: memref<32x32xf32, #tpu.memory_space<vmem>>, %arg5: memref<16x32xf32, #tpu.memory_space<vmem>>, %arg6: memref<16x32xf32, #tpu.memory_space<vmem>>) attributes {dimension_semantics = [#tpu.dimension_semantics<parallel>, #tpu.dimension_semantics<parallel>, #tpu.dimension_semantics<arbitrary>], iteration_bounds = array<i64: 1, 1, 1>, scalar_prefetch = 0 : i64, scratch_operands = 1 : i64, tpu.core_type = #tpu.core_type<tc>, window_params = [{transform_indices = @transform_0, window_bounds = array<i64: 16, 32>}, {transform_indices = @transform_1, window_bounds = array<i64: 32, 32>}, {transform_indices = @transform_2, window_bounds = array<i64: 16, 32>}]} {
    %c0_i32 = arith.constant 0 : i32
    %0 = arith.cmpi eq, %arg2, %c0_i32 : i32
    %1 = arith.extui %0 : i1 to i32
    %c0_i32_0 = arith.constant 0 : i32
    %2 = arith.cmpi ne, %1, %c0_i32_0 : i32
    scf.if %2 {
      %cst_10 = arith.constant 0.000000e+00 : f32
      %12 = vector.broadcast %cst_10 : f32 to vector<16x32xf32>
      %c0_11 = arith.constant 0 : index
      %c0_12 = arith.constant 0 : index
      %13 = vector.load %arg6[%c0_11, %c0_12] : memref<16x32xf32, #tpu.memory_space<vmem>>, vector<16x32xf32>
      tpu.vector_store %arg6[%c0_11, %c0_12], %12 {strides = array<i32>} : memref<16x32xf32, #tpu.memory_space<vmem>>, vector<16x32xf32>,
    } else {
    }
    %c0 = arith.constant 0 : index
    %c0_1 = arith.constant 0 : index
    %3 = vector.load %arg6[%c0, %c0_1] : memref<16x32xf32, #tpu.memory_space<vmem>>, vector<16x32xf32>
    %c0_2 = arith.constant 0 : index
    %c0_3 = arith.constant 0 : index
    %4 = vector.load %arg3[%c0_2, %c0_3] : memref<16x32xf32, #tpu.memory_space<vmem>>, vector<16x32xf32>
    %c0_4 = arith.constant 0 : index
    %c0_5 = arith.constant 0 : index
    %5 = vector.load %arg4[%c0_4, %c0_5] : memref<32x32xf32, #tpu.memory_space<vmem>>, vector<32x32xf32>
    %cst = arith.constant dense<0.000000e+00> : vector<16x32xf32>
    %6 = tpu.matmul %4, %5, %cst {dimension_numbers = #tpu.dot_dimension_numbers<[1], [1], [0], [0], [0, 0, 1, 0], [], []>} : vector<16x32xf32>, vector<32x32xf32>, vector<16x32xf32> -> vector<16x32xf32>
    %7 = arith.addf %3, %6 : vector<16x32xf32>
    %c0_6 = arith.constant 0 : index
    %c0_7 = arith.constant 0 : index
    %8 = vector.load %arg6[%c0_6, %c0_7] : memref<16x32xf32, #tpu.memory_space<vmem>>, vector<16x32xf32>
    tpu.vector_store %arg6[%c0_6, %c0_7], %7 {strides = array<i32>} : memref<16x32xf32, #tpu.memory_space<vmem>>, vector<16x32xf32>,
    %c0_i32_8 = arith.constant 0 : i32
    %9 = arith.cmpi eq, %arg2, %c0_i32_8 : i32
    %10 = arith.extui %9 : i1 to i32
    %c0_i32_9 = arith.constant 0 : i32
    %11 = arith.cmpi ne, %10, %c0_i32_9 : i32
    scf.if %11 {
      %c0_10 = arith.constant 0 : index
      %c0_11 = arith.constant 0 : index
      %12 = vector.load %arg6[%c0_10, %c0_11] : memref<16x32xf32, #tpu.memory_space<vmem>>, vector<16x32xf32>
      %c0_12 = arith.constant 0 : index
      %c0_13 = arith.constant 0 : index
      %13 = vector.load %arg5[%c0_12, %c0_13] : memref<16x32xf32, #tpu.memory_space<vmem>>, vector<16x32xf32>
      tpu.vector_store %arg5[%c0_12, %c0_13], %12 {strides = array<i32>} : memref<16x32xf32, #tpu.memory_space<vmem>>, vector<16x32xf32>,
    } else {
    }
    return
  }
  func.func @transform_0(%arg0: i32, %arg1: i32, %arg2: i32) -> (i32, i32) {
    %c0_i32 = arith.constant 0 : i32
    return %arg0, %arg2 : i32, i32
  }
  func.func @transform_1(%arg0: i32, %arg1: i32, %arg2: i32) -> (i32, i32) {
    %c0_i32 = arith.constant 0 : i32
    return %arg1, %arg2 : i32, i32
  }
  func.func @transform_2(%arg0: i32, %arg1: i32, %arg2: i32) -> (i32, i32) {
    %c0_i32 = arith.constant 0 : i32
    return %arg0, %arg1 : i32, i32
  }
}

</mosaic_0001>

<llo_original>
// kernel: tpu_custom_call.1
$region0: #{tpu_custom_call.1}
  #allocation0 [shape = 'u32[]', space=smem, size = 0x4, offset = 0x4, fixed_abs, tag = 'smem constant byte address 0x4 - core index']
  #allocation1 [shape = 'u32[72,128]{1,0:T(1,128)}', space=vmem, size = 0x9000, scoped, tag = 'internal scratch']
  #allocation2 [shape = 'f32[16,32]{1,0:T(8,128)}', space=vmem, size = 0x2000, scoped, tag = 'scratch operand']
  %s0 = inlined_call_operand.hbm [shape: f32[16,32], index: 0, kind: input, shape index: {}]
  %s1 = inlined_call_operand.hbm [shape: f32[32,32], index: 1, kind: input, shape index: {}]
  %s2 = inlined_call_operand.hbm [shape: f32[16,32], index: 2, kind: output, shape index: {}]
  %s3 = sld [smem:[#allocation0]]
  $region34: #{tpu_custom_call.1} parent=0
    _
  %s5 = ssub.s32 1, %s3
  %s6 = scalar_select 0, %s5, %s3
  $region1: #{tpu_custom_call.1} parent=0
    #allocation3 [shape = 'u8[8192]{0}', space=vmem, size = 0x2000, scoped, tag = 'input window, operand 0, single buffered']
    #allocation4 [shape = 's32[1]{0}', space=sflag, size = 0x4, scoped, tag = 'scoped memory for tpu_custom_call.1']
    #allocation5 [shape = 's32[1]{0}', space=sflag, size = 0x4, scoped, tag = 'scoped memory for tpu_custom_call.1']
    #allocation6 [shape = 'u8[16384]{0}', space=vmem, size = 0x4000, scoped, tag = 'input window, operand 1, single buffered']
    #allocation7 [shape = 's32[1]{0}', space=sflag, size = 0x4, scoped, tag = 'scoped memory for tpu_custom_call.1']
    #allocation8 [shape = 'u8[8192]{0}', space=vmem, size = 0x2000, scoped, tag = 'output window, operand 0, single buffered']
    %7 = vsyncpa [#allocation4], 0
    %8 = vsyncpa [#allocation7], 0
    %9 = vsyncpa [#allocation5], 0
    // Predicated region
    $region2: #{tpu_custom_call.1} parent=1 // pred_check
      _
    $region3: #{tpu_custom_call.1} parent=1 // pred_check_branch
      %11 = sbr.rel (0) target = $region5
    $region4: #{tpu_custom_call.1} parent=1 // pred_region
      %13 = vsyncadd [#allocation4], 0
      %s14 = sshll.u32 %s0, 4
      %s15 = int_to_ptr.hbm [resolvable:$true] %s14
      %s16 = sshll.u32 [#allocation3], 4
      %s17 = int_to_ptr.vmem [resolvable:$true] %s16
      %22 = dma.hbm_to_vmem [thread:$0]  %s15, 256, %s17, [#allocation4], 128, 128, 8
    $region5: #{tpu_custom_call.1} parent=1 // pred_fallthru
      _
    // Predicated region
    $region6: #{tpu_custom_call.1} parent=1 // pred_check
      _
    $region7: #{tpu_custom_call.1} parent=1 // pred_check_branch
      %24 = sbr.rel (0) target = $region9
    $region8: #{tpu_custom_call.1} parent=1 // pred_region
      %26 = vsyncadd [#allocation7], 0
      %s27 = sshll.u32 %s1, 4
      %s28 = int_to_ptr.hbm [resolvable:$true] %s27
      %s29 = sshll.u32 [#allocation6], 4
      %s30 = int_to_ptr.vmem [resolvable:$true] %s29
      %35 = dma.hbm_to_vmem [thread:$0]  %s28, 512, %s30, [#allocation7], 128, 128, 8
    $region9: #{tpu_custom_call.1} parent=1 // pred_fallthru
      _
    // Predicated region
    $region10: #{tpu_custom_call.1} parent=1 // pred_check
      _
    $region11: #{tpu_custom_call.1} parent=1 // pred_check_branch
      %37 = sbr.rel (0) target = $region13
    $region12: #{tpu_custom_call.1} parent=1 // pred_region
      %39 = dma.done [#allocation4], 256
    $region13: #{tpu_custom_call.1} parent=1 // pred_fallthru
      _
    // Predicated region
    $region14: #{tpu_custom_call.1} parent=1 // pred_check
      _
    $region15: #{tpu_custom_call.1} parent=1 // pred_check_branch
      %41 = sbr.rel (0) target = $region17
    $region16: #{tpu_custom_call.1} parent=1 // pred_region
      %43 = dma.done [#allocation7], 512
    $region17: #{tpu_custom_call.1} parent=1 // pred_fallthru
      _
    %p44 = scmp.eq.s32.totalorder 0, 0
    // Predicated region
    $region18: #{tpu_custom_call.1} parent=1 // pred_check
      %p45 = pneg %p44
    $region19: #{tpu_custom_call.1} parent=1 // pred_check_branch
      %47 = sbr.rel (%p45) target = $region21
    $region20: #{tpu_custom_call.1} parent=1 // pred_region
      %vm48 = vcmask 261120
      %49 = vst.msk [vmem:[#allocation2] sm:$0xff] %vm48, 0.0
      %50 = vst.msk [vmem:[#allocation2 + $0x8] sm:$0xff] %vm48, 0.0
    $region21: #{tpu_custom_call.1} parent=1 // pred_fallthru
      _
    %v51 = vld [vmem:[#allocation2] sm:$0xff]
    %v52 = vld [vmem:[#allocation2 + $0x8] sm:$0xff]
    %v53 = vld [vmem:[#allocation3] sm:$0xff]
    %v54 = vld [vmem:[#allocation3 + $0x8] sm:$0xff]
    %v55 = vld [vmem:[#allocation6] sm:$0xff]
    %v56 = vld [vmem:[#allocation6 + $0x8] sm:$0xff]
    %v57 = vld [vmem:[#allocation6 + $0x10] sm:$0xff]
    %v58 = vld [vmem:[#allocation6 + $0x18] sm:$0xff]
    %vm59 = vcmask 261120
    %v61 = vsel %vm59, %v53, 0
    %v64 = vsel %vm59, %v54, 0
    %v67 = vsel %vm59, %v55, 0
    %v70 = vsel %vm59, %v56, 0
    %v73 = vsel %vm59, %v57, 0
    %v76 = vsel %vm59, %v58, 0
    %78 = vmatpush.xpose.msra.mxu0 0.0
    %79 = vmatpush.xpose.msra.mxu0 0.0
    %80 = vmatpush.xpose.msra.mxu0 0.0
    %81 = vmatpush.xpose.msra.mxu0 0.0
    %82 = vmatpush.xpose.msra.mxu0 0.0
    %83 = vmatpush.xpose.msra.mxu0 0.0
    %84 = vmatpush.xpose.msra.mxu0 0.0
    %85 = vmatpush.xpose.msra.mxu0 0.0
    %86 = vmatpush.xpose.msra.mxu0 0.0
    %87 = vmatpush.xpose.msra.mxu0 0.0
    %88 = vmatpush.xpose.msra.mxu0 0.0
    %89 = vmatpush.xpose.msra.mxu0 0.0
    %90 = vmatpush.xpose.msra.mxu0 %v76
    %91 = vmatpush.xpose.msra.mxu0 %v73
    %92 = vmatpush.xpose.msra.mxu0 %v70
    %93 = vmatpush.xpose.msra.mxu0 %v67
    %94 = vmatmul.f32.gmra.mxu0 %v61
    %v95 = vpop.f32.mrf.mxu0
    %v96 = vadd.f32 0.0, %v95
    %97 = vmatmul.f32.gmra.mxu0 %v64
    %v98 = vpop.f32.mrf.mxu0
    %v99 = vadd.f32 0.0, %v98
    %100 = vdwg.mxu0
    %v101 = vadd.f32 %v51, %v96
    %v102 = vadd.f32 %v52, %v99
    %103 = vst.msk [vmem:[#allocation2] sm:$0xff] %vm59, %v101
    %104 = vst.msk [vmem:[#allocation2 + $0x8] sm:$0xff] %vm59, %v102
    // Predicated region
    $region22: #{tpu_custom_call.1} parent=1 // pred_check
      %p105 = pneg %p44
    $region23: #{tpu_custom_call.1} parent=1 // pred_check_branch
      %107 = sbr.rel (%p105) target = $region25
    $region24: #{tpu_custom_call.1} parent=1 // pred_region
      %v108 = vld [vmem:[#allocation2] sm:$0xff]
      %v109 = vld [vmem:[#allocation2 + $0x8] sm:$0xff]
      %110 = vst.msk [vmem:[#allocation8] sm:$0xff] %vm59, %v108
      %111 = vst.msk [vmem:[#allocation8 + $0x8] sm:$0xff] %vm59, %v109
    $region25: #{tpu_custom_call.1} parent=1 // pred_fallthru
      _
    // Predicated region
    $region26: #{tpu_custom_call.1} parent=1 // pred_check
      _
    $region27: #{tpu_custom_call.1} parent=1 // pred_check_branch
      %113 = sbr.rel (0) target = $region29
    $region28: #{tpu_custom_call.1} parent=1 // pred_region
      %115 = vsyncadd [#allocation5], 0
      %s116 = sshll.u32 [#allocation8], 4
      %s117 = int_to_ptr.vmem [resolvable:$true] %s116
      %s118 = sshll.u32 %s2, 4
      %s119 = int_to_ptr.hbm [resolvable:$true] %s118
      %124 = dma.vmem_to_hbm [thread:$0]  %s117, 256, %s119, [#allocation5], 128, 128, 8
    $region29: #{tpu_custom_call.1} parent=1 // pred_fallthru
      _
    // Predicated region
    $region30: #{tpu_custom_call.1} parent=1 // pred_check
      _
    $region31: #{tpu_custom_call.1} parent=1 // pred_check_branch
      %126 = sbr.rel (0) target = $region33
    $region32: #{tpu_custom_call.1} parent=1 // pred_region
      %128 = dma.done [#allocation5], 256
    $region33: #{tpu_custom_call.1} parent=1 // pred_fallthru
      _
    %129 = vsyncpa [#allocation4], 1
    %130 = vsyncpa [#allocation7], 1
    %131 = vsyncpa [#allocation5], 1

</llo_original>
